<compile_context>
chip_gen: v5e
topology: v5e:2x2
jax: 0.10.0
libtpu: 0.0.40
codegen_flags: <defaults>
</compile_context>

<pallas_src>
import functools

import jax
import jax.numpy as jnp
import numpy as np
from jax import lax
from jax.experimental import pallas as pl
from jax.experimental.pallas import tpu as pltpu

OUT_SCALE = 0.001


def _pick_batch(nx, per_sample_bytes, budget_bytes=8 * 1024 * 1024):
    """Largest divisor of nx with x block <= budget and (if possible) grid >= 2."""
    divisors = [d for d in range(1, nx + 1) if nx % d == 0]
    cands = [d for d in divisors if nx // d >= 2] or divisors
    fitting = [d for d in cands if d * per_sample_bytes <= budget_bytes]
    return max(fitting) if fitting else 1


def _siamfc_kernel(z_ref, x_ref, o_ref, st_ref, *, nz, W, hz, wz, OWp, out_scale):
    # z_ref: (nz, T, C)   all exemplars, VMEM-resident (constant index_map)
    # x_ref: (B, C, HW)   B search images, channels on sublanes, flat spatial on lanes
    # o_ref: (B, 1, OWp)  lane-dense flat response rows (wrapper crops/reshapes)
    # st_ref: (T, SF) f32 scratch: full correlation map for one sample
    B = x_ref.shape[0]
    HW = x_ref.shape[2]
    i = pl.program_id(0)

    @pl.loop(0, B)
    def _per_sample(s):
        e = (i * B + s) % nz                  # global exemplar pairing
        zt = z_ref[e]                         # (T, C)
        xs = x_ref[s]                         # (C, HW)
        # One MXU matmul per sample: S[t, hw] = sum_c z[e, t, c] * x[s, c, hw]
        st_ref[:, :HW] = jnp.dot(zt, xs, preferred_element_type=jnp.float32)

        # hz*wz shifted adds: acc[p*W + q] = sum_{a,b} S[a*wz+b, (p+a)*W + (q+b)]
        acc = jnp.zeros((1, OWp), jnp.float32)
        for a in range(hz):
            for b in range(wz):
                t = a * wz + b
                start = a * W + b
                acc = acc + st_ref[t:t + 1, start:start + OWp]

        o_ref[s] = (acc * out_scale).astype(o_ref.dtype)


def siamfc_forward(z, x, out_scale=OUT_SCALE, compute_dtype=jnp.float32):
    """SiamFC head. z: (nz, C, hz, wz), x: (nx, C, H, W) NCHW.
    Returns (nx, 1, H-hz+1, W-wz+1), matching the PyTorch module."""
    nz, c, hz, wz = z.shape
    nx, cx, H, W = x.shape
    assert cx == c and nx % nz == 0
    Ho, Wo = H - hz + 1, W - wz + 1
    T = hz * wz
    HW = H * W
    OW = Ho * W                                   # flat (row-major, stride W) output span
    OWp = ((OW + 127) // 128) * 128               # lane-dense store width
    SF = (hz - 1) * W + (wz - 1) + OWp            # scratch flat width (all tap windows in-bounds)

    # z -> (nz, T, C): z_tc[e, a*wz+b, c] = z[e, c, a, b].  Tiny tensor.
    z_tc = jnp.transpose(z, (0, 2, 3, 1)).reshape(nz, T, c).astype(compute_dtype)
    # x stays NCHW; merging (H, W) is a free contiguous reshape (no HBM transpose pass).
    x_flat = jnp.reshape(x, (nx, c, HW)).astype(compute_dtype)

    per_sample_bytes = c * HW * jnp.dtype(compute_dtype).itemsize
    B = _pick_batch(nx, per_sample_bytes)

    kernel = functools.partial(
        _siamfc_kernel, nz=nz, W=W, hz=hz, wz=wz, OWp=OWp,
        out_scale=float(out_scale))

    out = pl.pallas_call(
        kernel,
        out_shape=jax.ShapeDtypeStruct((nx, 1, OWp), jnp.float32),
        grid=(nx // B,),
        in_specs=[
            # All exemplars: constant block index -> loaded once, VMEM-resident.
            pl.BlockSpec((nz, T, c), lambda i: (0, 0, 0)),
            # B consecutive search images per step.
            pl.BlockSpec((B, c, HW), lambda i: (i, 0, 0)),
        ],
        out_specs=pl.BlockSpec((B, 1, OWp), lambda i: (i, 0, 0)),
        scratch_shapes=[pltpu.VMEM((T, SF), jnp.float32)],
        compiler_params=pltpu.CompilerParams(
            dimension_semantics=("parallel",),
            vmem_limit_bytes=32 * 1024 * 1024,
        ),
    )(z_tc, x_flat)

    # out[i, 0, p*W + q] holds the response at (p, q); crop/reshape in the wrapper.
    out = out[:, 0, :OW].reshape(nx, Ho, W)[:, :, :Wo]
    return out.reshape(nx, 1, Ho, Wo)


def siamfc_ref(z, x, out_scale=OUT_SCALE):
    """Pure-JAX reference replicating SiamFC._fast_xcorr exactly."""
    nz = z.shape[0]
    nx, c, h, w = x.shape
    xv = x.reshape(-1, nz * c, h, w)
    out = lax.conv_general_dilated(
        xv, z, window_strides=(1, 1), padding="VALID",
        dimension_numbers=("NCHW", "OIHW", "NCHW"),
        feature_group_count=nz,
        precision=lax.Precision.HIGHEST)
    out = out.reshape(nx, -1, out.shape[-2], out.shape[-1])
    return out * out_scale


if __name__ == "__main__":
    key = jax.random.PRNGKey(0)
    kz, kx = jax.random.split(key)

    # Small shapes consistent with the module's forward (standard SiamFC pairing).
    nz, nx, c = 2, 2, 4
    hz = wz = 6
    H = W = 16

    z = jax.random.normal(kz, (nz, c, hz, wz), dtype=jnp.float32)
    x = jax.random.normal(kx, (nx, c, H, W), dtype=jnp.float32)

    out = siamfc_forward(z, x)
    jax.block_until_ready(out)

    ref = siamfc_ref(z, x)
    assert out.shape == ref.shape == (nx, 1, H - hz + 1, W - wz + 1)
    np.testing.assert_allclose(np.asarray(out), np.asarray(ref),
                               rtol=1e-3, atol=1e-5)

    print("KERNEL_OK")
</pallas_src>

<mosaic_0001>
module attributes {stable_mosaic.version = 11 : i64} {
  func.func @_siamfc_kernel(%arg0: i32, %arg1: memref<2x36x4xf32, #tpu.memory_space<vmem>>, %arg2: memref<1x4x256xf32, #tpu.memory_space<vmem>>, %arg3: memref<1x1x256xf32, #tpu.memory_space<vmem>>, %arg4: memref<36x341xf32, #tpu.memory_space<vmem>>) attributes {dimension_semantics = [#tpu.dimension_semantics<parallel>], iteration_bounds = array<i64: 2>, scalar_prefetch = 0 : i64, scratch_operands = 1 : i64, tpu.core_type = #tpu.core_type<tc>, window_params = [{pipeline_mode = #tpu.pipeline_mode<synchronous>, transform_indices = @transform_0, window_bounds = array<i64: 2, 36, 4>}, {transform_indices = @transform_1, window_bounds = array<i64: 1, 4, 256>}, {transform_indices = @transform_2, window_bounds = array<i64: 1, 1, 256>}]} {
    %c0_i32 = arith.constant 0 : i32
    %c1_i32 = arith.constant 1 : i32
    %0 = arith.muli %c0_i32, %c1_i32 : i32
    %c0_i32_0 = arith.constant 0 : i32
    %1 = arith.addi %c0_i32_0, %0 : i32
    %c1_i32_1 = arith.constant 1 : i32
    %2 = arith.muli %arg0, %c1_i32_1 : i32
    %3 = arith.addi %2, %1 : i32
    %c2_i32 = arith.constant 2 : i32
    %c0_i32_2 = arith.constant 0 : i32
    %4 = arith.cmpi eq, %c2_i32, %c0_i32_2 : i32
    %c1_i32_3 = arith.constant 1 : i32
    %5 = arith.select %4, %c1_i32_3, %c2_i32 : i32
    %6 = arith.remsi %3, %5 : i32
    %c0_i32_4 = arith.constant 0 : i32
    %7 = arith.cmpi ne, %6, %c0_i32_4 : i32
    %c0_i32_5 = arith.constant 0 : i32
    %8 = arith.cmpi slt, %6, %c0_i32_5 : i32
    %c0_i32_6 = arith.constant 0 : i32
    %9 = arith.cmpi slt, %5, %c0_i32_6 : i32
    %10 = arith.xori %8, %9 : i1
    %11 = arith.andi %10, %7 : i1
    %12 = arith.addi %6, %5 : i32
    %13 = arith.select %11, %12, %6 : i32
    %14 = arith.index_cast %13 : i32 to index
    %c0 = arith.constant 0 : index
    %c0_7 = arith.constant 0 : index
    %15 = vector.load %arg1[%14, %c0, %c0_7] : memref<2x36x4xf32, #tpu.memory_space<vmem>>, vector<1x36x4xf32>
    %16 = vector.shape_cast %15 : vector<1x36x4xf32> to vector<36x4xf32>
    %17 = arith.index_cast %1 : i32 to index
    %c0_8 = arith.constant 0 : index
    %c0_9 = arith.constant 0 : index
    %18 = vector.load %arg2[%17, %c0_8, %c0_9] : memref<1x4x256xf32, #tpu.memory_space<vmem>>, vector<1x4x256xf32>
    %19 = vector.shape_cast %18 : vector<1x4x256xf32> to vector<4x256xf32>
    %cst = arith.constant dense<0.000000e+00> : vector<36x256xf32>
    %20 = tpu.matmul %16, %19, %cst {dimension_numbers = #tpu.dot_dimension_numbers<[1], [0], [0], [1], [0, 0, 1, 1], [], []>} : vector<36x4xf32>, vector<4x256xf32>, vector<36x256xf32> -> vector<36x256xf32>
    %c0_10 = arith.constant 0 : index
    %c0_11 = arith.constant 0 : index
    %21 = vector.load %arg4[%c0_10, %c0_11] : memref<36x341xf32, #tpu.memory_space<vmem>>, vector<36x256xf32>
    tpu.vector_store %arg4[%c0_10, %c0_11], %20 {strides = array<i32>} : memref<36x341xf32, #tpu.memory_space<vmem>>, vector<36x256xf32>,
    %cst_12 = arith.constant 0.000000e+00 : f32
    %22 = vector.broadcast %cst_12 : f32 to vector<1x256xf32>
    %c0_13 = arith.constant 0 : index
    %c0_14 = arith.constant 0 : index
    %23 = vector.load %arg4[%c0_13, %c0_14] : memref<36x341xf32, #tpu.memory_space<vmem>>, vector<1x256xf32>
    %24 = arith.addf %22, %23 : vector<1x256xf32>
    %c1 = arith.constant 1 : index
    %c1_15 = arith.constant 1 : index
    %25 = vector.load %arg4[%c1, %c1_15] : memref<36x341xf32, #tpu.memory_space<vmem>>, vector<1x256xf32>
    %26 = arith.addf %24, %25 : vector<1x256xf32>
    %c2 = arith.constant 2 : index
    %c2_16 = arith.constant 2 : index
    %27 = vector.load %arg4[%c2, %c2_16] : memref<36x341xf32, #tpu.memory_space<vmem>>, vector<1x256xf32>
    %28 = arith.addf %26, %27 : vector<1x256xf32>
    %c3 = arith.constant 3 : index
    %c3_17 = arith.constant 3 : index
    %29 = vector.load %arg4[%c3, %c3_17] : memref<36x341xf32, #tpu.memory_space<vmem>>, vector<1x256xf32>
    %30 = arith.addf %28, %29 : vector<1x256xf32>
    %c4 = arith.constant 4 : index
    %c4_18 = arith.constant 4 : index
    %31 = vector.load %arg4[%c4, %c4_18] : memref<36x341xf32, #tpu.memory_space<vmem>>, vector<1x256xf32>
    %32 = arith.addf %30, %31 : vector<1x256xf32>
    %c5 = arith.constant 5 : index
    %c5_19 = arith.constant 5 : index
    %33 = vector.load %arg4[%c5, %c5_19] : memref<36x341xf32, #tpu.memory_space<vmem>>, vector<1x256xf32>
    %34 = arith.addf %32, %33 : vector<1x256xf32>
    %c6 = arith.constant 6 : index
    %c16 = arith.constant 16 : index
    %35 = vector.load %arg4[%c6, %c16] : memref<36x341xf32, #tpu.memory_space<vmem>>, vector<1x256xf32>
    %36 = arith.addf %34, %35 : vector<1x256xf32>
    %c7 = arith.constant 7 : index
    %c17 = arith.constant 17 : index
    %37 = vector.load %arg4[%c7, %c17] : memref<36x341xf32, #tpu.memory_space<vmem>>, vector<1x256xf32>
    %38 = arith.addf %36, %37 : vector<1x256xf32>
    %c8 = arith.constant 8 : index
    %c18 = arith.constant 18 : index
    %39 = vector.load %arg4[%c8, %c18] : memref<36x341xf32, #tpu.memory_space<vmem>>, vector<1x256xf32>
    %40 = arith.addf %38, %39 : vector<1x256xf32>
    %c9 = arith.constant 9 : index
    %c19 = arith.constant 19 : index
    %41 = vector.load %arg4[%c9, %c19] : memref<36x341xf32, #tpu.memory_space<vmem>>, vector<1x256xf32>
    %42 = arith.addf %40, %41 : vector<1x256xf32>
    %c10 = arith.constant 10 : index
    %c20 = arith.constant 20 : index
    %43 = vector.load %arg4[%c10, %c20] : memref<36x341xf32, #tpu.memory_space<vmem>>, vector<1x256xf32>
    %44 = arith.addf %42, %43 : vector<1x256xf32>
    %c11 = arith.constant 11 : index
    %c21 = arith.constant 21 : index
    %45 = vector.load %arg4[%c11, %c21] : memref<36x341xf32, #tpu.memory_space<vmem>>, vector<1x256xf32>
    %46 = arith.addf %44, %45 : vector<1x256xf32>
    %c12 = arith.constant 12 : index
    %c32 = arith.constant 32 : index
    %47 = vector.load %arg4[%c12, %c32] : memref<36x341xf32, #tpu.memory_space<vmem>>, vector<1x256xf32>
    %48 = arith.addf %46, %47 : vector<1x256xf32>
    %c13 = arith.constant 13 : index
    %c33 = arith.constant 33 : index
    %49 = vector.load %arg4[%c13, %c33] : memref<36x341xf32, #tpu.memory_space<vmem>>, vector<1x256xf32>
    %50 = arith.addf %48, %49 : vector<1x256xf32>
    %c14 = arith.constant 14 : index
    %c34 = arith.constant 34 : index
    %51 = vector.load %arg4[%c14, %c34] : memref<36x341xf32, #tpu.memory_space<vmem>>, vector<1x256xf32>
    %52 = arith.addf %50, %51 : vector<1x256xf32>
    %c15 = arith.constant 15 : index
    %c35 = arith.constant 35 : index
    %53 = vector.load %arg4[%c15, %c35] : memref<36x341xf32, #tpu.memory_space<vmem>>, vector<1x256xf32>
    %54 = arith.addf %52, %53 : vector<1x256xf32>
    %c16_20 = arith.constant 16 : index
    %c36 = arith.constant 36 : index
    %55 = vector.load %arg4[%c16_20, %c36] : memref<36x341xf32, #tpu.memory_space<vmem>>, vector<1x256xf32>
    %56 = arith.addf %54, %55 : vector<1x256xf32>
    %c17_21 = arith.constant 17 : index
    %c37 = arith.constant 37 : index
    %57 = vector.load %arg4[%c17_21, %c37] : memref<36x341xf32, #tpu.memory_space<vmem>>, vector<1x256xf32>
    %58 = arith.addf %56, %57 : vector<1x256xf32>
    %c18_22 = arith.constant 18 : index
    %c48 = arith.constant 48 : index
    %59 = vector.load %arg4[%c18_22, %c48] : memref<36x341xf32, #tpu.memory_space<vmem>>, vector<1x256xf32>
    %60 = arith.addf %58, %59 : vector<1x256xf32>
    %c19_23 = arith.constant 19 : index
    %c49 = arith.constant 49 : index
    %61 = vector.load %arg4[%c19_23, %c49] : memref<36x341xf32, #tpu.memory_space<vmem>>, vector<1x256xf32>
    %62 = arith.addf %60, %61 : vector<1x256xf32>
    %c20_24 = arith.constant 20 : index
    %c50 = arith.constant 50 : index
    %63 = vector.load %arg4[%c20_24, %c50] : memref<36x341xf32, #tpu.memory_space<vmem>>, vector<1x256xf32>
    %64 = arith.addf %62, %63 : vector<1x256xf32>
    %c21_25 = arith.constant 21 : index
    %c51 = arith.constant 51 : index
    %65 = vector.load %arg4[%c21_25, %c51] : memref<36x341xf32, #tpu.memory_space<vmem>>, vector<1x256xf32>
    %66 = arith.addf %64, %65 : vector<1x256xf32>
    %c22 = arith.constant 22 : index
    %c52 = arith.constant 52 : index
    %67 = vector.load %arg4[%c22, %c52] : memref<36x341xf32, #tpu.memory_space<vmem>>, vector<1x256xf32>
    %68 = arith.addf %66, %67 : vector<1x256xf32>
    %c23 = arith.constant 23 : index
    %c53 = arith.constant 53 : index
    %69 = vector.load %arg4[%c23, %c53] : memref<36x341xf32, #tpu.memory_space<vmem>>, vector<1x256xf32>
    %70 = arith.addf %68, %69 : vector<1x256xf32>
    %c24 = arith.constant 24 : index
    %c64 = arith.constant 64 : index
    %71 = vector.load %arg4[%c24, %c64] : memref<36x341xf32, #tpu.memory_space<vmem>>, vector<1x256xf32>
    %72 = arith.addf %70, %71 : vector<1x256xf32>
    %c25 = arith.constant 25 : index
    %c65 = arith.constant 65 : index
    %73 = vector.load %arg4[%c25, %c65] : memref<36x341xf32, #tpu.memory_space<vmem>>, vector<1x256xf32>
    %74 = arith.addf %72, %73 : vector<1x256xf32>
    %c26 = arith.constant 26 : index
    %c66 = arith.constant 66 : index
    %75 = vector.load %arg4[%c26, %c66] : memref<36x341xf32, #tpu.memory_space<vmem>>, vector<1x256xf32>
    %76 = arith.addf %74, %75 : vector<1x256xf32>
    %c27 = arith.constant 27 : index
    %c67 = arith.constant 67 : index
    %77 = vector.load %arg4[%c27, %c67] : memref<36x341xf32, #tpu.memory_space<vmem>>, vector<1x256xf32>
    %78 = arith.addf %76, %77 : vector<1x256xf32>
    %c28 = arith.constant 28 : index
    %c68 = arith.constant 68 : index
    %79 = vector.load %arg4[%c28, %c68] : memref<36x341xf32, #tpu.memory_space<vmem>>, vector<1x256xf32>
    %80 = arith.addf %78, %79 : vector<1x256xf32>
    %c29 = arith.constant 29 : index
    %c69 = arith.constant 69 : index
    %81 = vector.load %arg4[%c29, %c69] : memref<36x341xf32, #tpu.memory_space<vmem>>, vector<1x256xf32>
    %82 = arith.addf %80, %81 : vector<1x256xf32>
    %c30 = arith.constant 30 : index
    %c80 = arith.constant 80 : index
    %83 = vector.load %arg4[%c30, %c80] : memref<36x341xf32, #tpu.memory_space<vmem>>, vector<1x256xf32>
    %84 = arith.addf %82, %83 : vector<1x256xf32>
    %c31 = arith.constant 31 : index
    %c81 = arith.constant 81 : index
    %85 = vector.load %arg4[%c31, %c81] : memref<36x341xf32, #tpu.memory_space<vmem>>, vector<1x256xf32>
    %86 = arith.addf %84, %85 : vector<1x256xf32>
    %c32_26 = arith.constant 32 : index
    %c82 = arith.constant 82 : index
    %87 = vector.load %arg4[%c32_26, %c82] : memref<36x341xf32, #tpu.memory_space<vmem>>, vector<1x256xf32>
    %88 = arith.addf %86, %87 : vector<1x256xf32>
    %c33_27 = arith.constant 33 : index
    %c83 = arith.constant 83 : index
    %89 = vector.load %arg4[%c33_27, %c83] : memref<36x341xf32, #tpu.memory_space<vmem>>, vector<1x256xf32>
    %90 = arith.addf %88, %89 : vector<1x256xf32>
    %c34_28 = arith.constant 34 : index
    %c84 = arith.constant 84 : index
    %91 = vector.load %arg4[%c34_28, %c84] : memref<36x341xf32, #tpu.memory_space<vmem>>, vector<1x256xf32>
    %92 = arith.addf %90, %91 : vector<1x256xf32>
    %c35_29 = arith.constant 35 : index
    %c85 = arith.constant 85 : index
    %93 = vector.load %arg4[%c35_29, %c85] : memref<36x341xf32, #tpu.memory_space<vmem>>, vector<1x256xf32>
    %94 = arith.addf %92, %93 : vector<1x256xf32>
    %cst_30 = arith.constant 1.000000e-03 : f32
    %95 = vector.broadcast %cst_30 : f32 to vector<1x256xf32>
    %96 = arith.mulf %94, %95 : vector<1x256xf32>
    %97 = arith.index_cast %1 : i32 to index
    %c0_31 = arith.constant 0 : index
    %c0_32 = arith.constant 0 : index
    %98 = vector.load %arg3[%97, %c0_31, %c0_32] : memref<1x1x256xf32, #tpu.memory_space<vmem>>, vector<1x1x256xf32>
    %99 = vector.shape_cast %98 : vector<1x1x256xf32> to vector<1x256xf32>
    %100 = vector.shape_cast %96 : vector<1x256xf32> to vector<1x1x256xf32>
    tpu.vector_store %arg3[%97, %c0_31, %c0_32], %100 {strides = array<i32>} : memref<1x1x256xf32, #tpu.memory_space<vmem>>, vector<1x1x256xf32>,
    %c1_i32_33 = arith.constant 1 : i32
    return
  }
  func.func @transform_0(%arg0: i32) -> (i32, i32, i32) {
    %c0_i32 = arith.constant 0 : i32
    %c0_i32_0 = arith.constant 0 : i32
    %c0_i32_1 = arith.constant 0 : i32
    %c0_i32_2 = arith.constant 0 : i32
    return %c0_i32, %c0_i32_0, %c0_i32_1 : i32, i32, i32
  }
  func.func @transform_1(%arg0: i32) -> (i32, i32, i32) {
    %c0_i32 = arith.constant 0 : i32
    %c0_i32_0 = arith.constant 0 : i32
    %c0_i32_1 = arith.constant 0 : i32
    return %arg0, %c0_i32, %c0_i32_0 : i32, i32, i32
  }
  func.func @transform_2(%arg0: i32) -> (i32, i32, i32) {
    %c0_i32 = arith.constant 0 : i32
    %c0_i32_0 = arith.constant 0 : i32
    %c0_i32_1 = arith.constant 0 : i32
    return %arg0, %c0_i32, %c0_i32_0 : i32, i32, i32
  }
}

</mosaic_0001>

<llo_original>
// kernel: tpu_custom_call.1
$region0: #{tpu_custom_call.1}
  #allocation0 [shape = 'u32[]', space=smem, size = 0x4, offset = 0x4, fixed_abs, tag = 'smem constant byte address 0x4 - core index']
  #allocation1 [shape = 'u32[72,128]{1,0:T(1,128)}', space=vmem, size = 0x9000, scoped, tag = 'internal scratch']
  #allocation2 [shape = 'f32[36,341]{1,0:T(8,128)}', space=vmem, size = 0xf000, scoped, tag = 'scratch operand']
  %s0 = inlined_call_operand.vmem [shape: f32[2,36,4], index: 0, kind: input, shape index: {}]
  %s1 = inlined_call_operand.vmem [shape: f32[2,4,256], index: 1, kind: input, shape index: {}]
  %s2 = inlined_call_operand.hbm [shape: f32[2,1,256], index: 2, kind: output, shape index: {}]
  %s3 = sld [smem:[#allocation0]]
  $region41: #{tpu_custom_call.1} parent=0
    _
  %s5 = ssub.s32 1, %s3
  %s6 = scalar_select 0, %s5, %s3
  $region1: #{tpu_custom_call.1} parent=0
    #allocation3 [shape = 'u8[2048]{0}', space=vmem, size = 0x800, scoped, tag = 'output window, operand 0']
    #allocation4 [shape = 's32[2]{0}', space=sflag, size = 0x8, scoped, tag = 'scoped memory for tpu_custom_call.1']
    %7 = vsyncpa [#allocation4], 0
    %s8 = scalar_lea.sflag [#allocation4], 1
    %9 = vsyncpa %s8, 0
    loop: start=0, step=1, limit=4
    $region2: #{tpu_custom_call.1} parent=1 // loop_pre_header
      _
    $region3: #{tpu_custom_call.1} parent=1 // loop_header
      %s11 = sphi 0, %s15
      %p12 = scmp.ge.s32.totalorder %s11, 4
      %s19 = sphi 0, %s19
      %s21 = sphi 0, %s19
      %s22 = sphi 0, %s21
      %s36 = sphi 0, %s22
      %s42 = sphi 0, %s44
      %s45 = sphi 0, %s42
      %s46 = sphi 0, %s45
      %s62 = sphi 0, %s46
      %s68 = sphi 0, %s70
      %s71 = sphi 0, %s68
      %s72 = sphi 0, %s71
      %s88 = sphi 0, %s72
    $region4: #{tpu_custom_call.1} parent=1 // loop_header_branch
      %14 = sbr.rel (%p12) target = $region8
    $region5: #{tpu_custom_call.1} parent=1 // loop_body
      %s16 = ssub.s32 %s11, 1
      %s17 = ssub.s32 %s11, 2
      %s18 = sadd.s32 %s11, 1
      %s20 = sadd.s32 %s19, 1
      %p23 = scmp.eq.s32.totalorder %s11, 1
      %p24 = scmp.ne.s32.totalorder %s19, %s21
      %p25 = scmp.eq.s32.totalorder %s11, 0
      %p26 = por %p24, %p25
      %p27 = scmp.ne.s32.totalorder %s19, %s21
      %p28 = scmp.eq.s32.totalorder %s16, 1
      %p29 = por %p27, %p28
      %p30 = scmp.ne.s32.totalorder %s21, %s22
      %p31 = scmp.eq.s32.totalorder %s16, 0
      %p32 = por %p30, %p31
      %p33 = scmp.ne.s32.totalorder %s21, %s22
      %p34 = scmp.eq.s32.totalorder %s17, 1
      %p35 = por %p33, %p34
      %p37 = scmp.ne.s32.totalorder %s22, %s36
      %p38 = scmp.eq.s32.totalorder %s17, 0
      %p39 = por %p37, %p38
      %s40 = ssub.s32 %s11, %s18
      %p41 = scmp.eq.s32.totalorder %s40, 0
      %s43 = sadd.s32 %s42, 1
      %s44 = scalar_select %p41, %s42, %s43
      %p47 = pneg %p41
      %p48 = scmp.eq.s32.totalorder %s11, 1
      %p49 = por %p47, %p48
      %p50 = scmp.ne.s32.totalorder %s42, %s45
      %p51 = scmp.eq.s32.totalorder %s11, 0
      %p52 = por %p50, %p51
      %p53 = scmp.ne.s32.totalorder %s42, %s45
      %p54 = scmp.eq.s32.totalorder %s16, 1
      %p55 = por %p53, %p54
      %p56 = scmp.ne.s32.totalorder %s45, %s46
      %p57 = scmp.eq.s32.totalorder %s16, 0
      %p58 = por %p56, %p57
      %p59 = scmp.ne.s32.totalorder %s45, %s46
      %p60 = scmp.eq.s32.totalorder %s17, 1
      %p61 = por %p59, %p60
      %p63 = scmp.ne.s32.totalorder %s46, %s62
      %p64 = scmp.eq.s32.totalorder %s17, 0
      %p65 = por %p63, %p64
      %s66 = ssub.s32 %s11, %s18
      %p67 = scmp.eq.s32.totalorder %s66, 0
      %s69 = sadd.s32 %s68, 1
      %s70 = scalar_select %p67, %s68, %s69
      %p73 = pneg %p67
      %p74 = scmp.eq.s32.totalorder %s11, 1
      %p75 = por %p73, %p74
      %p76 = scmp.ne.s32.totalorder %s68, %s71
      %p77 = scmp.eq.s32.totalorder %s11, 0
      %p78 = por %p76, %p77
      %p79 = scmp.ne.s32.totalorder %s68, %s71
      %p80 = scmp.eq.s32.totalorder %s16, 1
      %p81 = por %p79, %p80
      %p82 = scmp.ne.s32.totalorder %s71, %s72
      %p83 = scmp.eq.s32.totalorder %s16, 0
      %p84 = por %p82, %p83
      %p85 = scmp.ne.s32.totalorder %s71, %s72
      %p86 = scmp.eq.s32.totalorder %s17, 1
      %p87 = por %p85, %p86
      %p89 = scmp.ne.s32.totalorder %s72, %s88
      %p90 = scmp.eq.s32.totalorder %s17, 0
      %p91 = por %p89, %p90
      %p92 = scmp.le.s32.totalorder 1, %s11
      %p93 = scmp.lt.s32.totalorder %s11, 3
      %p94 = pnand %p92, %p93
      %p95 = pneg %p94
      // Predicated region
      $region9: #{tpu_custom_call.1} parent=5 // pred_check
        _
      $region10: #{tpu_custom_call.1} parent=5 // pred_check_branch
        %97 = sbr.rel (%p94) target = $region12
      $region11: #{tpu_custom_call.1} parent=5 // pred_region
        %s98 = ssub.s32 %s11, 1
        // Predicated region
        $region13: #{tpu_custom_call.1} parent=11 // pred_check
          %p99 = pneg %p32
        $region14: #{tpu_custom_call.1} parent=11 // pred_check_branch
          %101 = sbr.rel (%p99) target = $region16
        $region15: #{tpu_custom_call.1} parent=11 // pred_region
          _
        $region16: #{tpu_custom_call.1} parent=11 // pred_fallthru
          _
      $region12: #{tpu_custom_call.1} parent=5 // pred_fallthru
        _
      %p102 = scmp.lt.s32.totalorder %s11, 2
      // Predicated region
      $region17: #{tpu_custom_call.1} parent=5 // pred_check
        %p103 = pneg %p102
      $region18: #{tpu_custom_call.1} parent=5 // pred_check_branch
        %105 = sbr.rel (%p103) target = $region20
      $region19: #{tpu_custom_call.1} parent=5 // pred_region
        // Predicated region
        $region21: #{tpu_custom_call.1} parent=19 // pred_check
          %p106 = pneg %p52
        $region22: #{tpu_custom_call.1} parent=19 // pred_check_branch
          %108 = sbr.rel (%p106) target = $region24
        $region23: #{tpu_custom_call.1} parent=19 // pred_region
          %p109 = scmp.lt.s32.totalorder %s11, 1
          %s110 = scalar_select %p109, %s11, 1
          %s111 = smul.addr %s110, 2
          %s112 = smul.addr %s111, 4
          %s113 = scalar_lea.vmem %s1, %s112
        $region24: #{tpu_custom_call.1} parent=19 // pred_fallthru
          _
      $region20: #{tpu_custom_call.1} parent=5 // pred_fallthru
        _
      %p114 = scmp.le.s32.totalorder 1, %s11
      %p115 = scmp.lt.s32.totalorder %s11, 3
      %p116 = pnand %p114, %p115
      %p117 = pneg %p116
      // Predicated region
      $region25: #{tpu_custom_call.1} parent=5 // pred_check
        _
      $region26: #{tpu_custom_call.1} parent=5 // pred_check_branch
        %119 = sbr.rel (%p116) target = $region28
      $region27: #{tpu_custom_call.1} parent=5 // pred_region
        %s120 = ssub.s32 %s11, 1
        %p121 = pneg %p32
        %p122 = pneg %p29
        %p123 = scmp.lt.s32.totalorder %s16, 1
        %s124 = scalar_select %p123, %s16, 1
        %s125 = smul.addr %s124, 2
        %s126 = smul.addr %s125, 4
        %s127 = scalar_lea.vmem %s1, %s126
        %p128 = pneg %p58
        %p129 = pneg %p55
        %p130 = pneg %p84
        %p131 = pneg %p81
        %s132 = sand.u32 %s71, 1
        %s133 = scalar_lea.sflag [#allocation4], %s132
        %s134 = sand.u32 %s71, 1
        %s135 = smul.addr %s134, 2
        %s136 = scalar_lea.vmem [#allocation3], %s135
        %p137 = scmp.lt.s32.totalorder %s16, 1
        %s138 = scalar_select %p137, %s16, 1
        %s139 = smul.addr %s138, 2
        %s140 = smul.addr %s139, 4
        %s141 = scalar_lea.vmem %s1, %s140
        %p142 = scmp.lt.s32.totalorder %s16, 0
        %s143 = ssub.s32 0, %s16
        %s144 = scalar_select %p142, %s143, %s16
        %s145 = sand.u32 %s144, 1
        %s146 = ssub.s32 0, %s145
        %s147 = scalar_select %p142, %s146, %s145
        %p148 = scmp.ne.s32.totalorder %s147, 0
        %p149 = scmp.lt.s32.totalorder %s147, 0
        %p150 = pnand %p149, %p148
        %p151 = pneg %p150
        %s152 = sadd.s32 %s147, 2
        %s153 = scalar_select %p151, %s152, %s147
        %s154 = smul.u32 %s153, 40
        %s155 = scalar_lea.vmem %s0, %s154
        %v156 = vld [vmem:[%s155] sm:$0xff]
        %v157 = vld [vmem:[%s155 + $0x8] sm:$0xff]
        %v158 = vld [vmem:[%s155 + $0x10] sm:$0xff]
        %v159 = vld [vmem:[%s155 + $0x18] sm:$0xff]
        %v160 = vld [vmem:[%s155 + $0x20] sm:$0xf]
        %v161 = vld [vmem:[%s141] sm:$0xff]
        %163 = vst [vmem:[#allocation1] ss:$2 sm:$0xff] %v161
        %v164 = vld.sshfl [vmem:[#allocation1] sm:$0xff pattern:$0x75316420]
        %v165 = vld.sshfl [vmem:[#allocation1 + $0x8] sm:$0xff pattern:$0x75316420]
        %vm166 = vcmask 31744
        %v168 = vsel %vm166, %v156, 0
        %v171 = vsel %vm166, %v157, 0
        %v174 = vsel %vm166, %v158, 0
        %v177 = vsel %vm166, %v159, 0
        %v180 = vsel %vm166, %v160, 0
        %vm182 = vcmask 1043456
        %v183 = vsel %vm182, %v164, 0
        %v185 = vsel %vm182, %v165, 0
        %187 = vmatpush.msra.mxu0 0.0
        %188 = vmatpush.msra.mxu0 0.0
        %189 = vmatpush.msra.mxu0 0.0
        %190 = vmatpush.msra.mxu0 0.0
        %191 = vmatpush.msra.mxu0 0.0
        %192 = vmatpush.msra.mxu0 0.0
        %193 = vmatpush.msra.mxu0 0.0
        %194 = vmatpush.msra.mxu0 0.0
        %195 = vmatpush.msra.mxu0 0.0
        %196 = vmatpush.msra.mxu0 0.0
        %197 = vmatpush.msra.mxu0 0.0
        %198 = vmatpush.msra.mxu0 0.0
        %199 = vmatpush.msra.mxu0 0.0
        %200 = vmatpush.msra.mxu0 0.0
        %201 = vmatpush.msra.mxu0 0.0
        %202 = vmatpush.msra.mxu0 %v183
        %203 = vmatmul.f32.gmra.mxu0 %v168
        %v204 = vpop.f32.mrf.mxu0
        %v205 = vadd.f32 0.0, %v204
        %206 = vmatmul.f32.gmra.mxu0 %v171
        %v207 = vpop.f32.mrf.mxu0
        %v208 = vadd.f32 0.0, %v207
        %209 = vmatmul.f32.gmra.mxu0 %v174
        %v210 = vpop.f32.mrf.mxu0
        %v211 = vadd.f32 0.0, %v210
        %212 = vmatmul.f32.gmra.mxu0 %v177
        %v213 = vpop.f32.mrf.mxu0
        %v214 = vadd.f32 0.0, %v213
        %215 = vmatmul.f32.gmra.mxu0 %v180
        %v216 = vpop.f32.mrf.mxu0
        %v217 = vadd.f32 0.0, %v216
        %218 = vdwg.mxu0
        %219 = vmatpush.msra.mxu0 0.0
        %220 = vmatpush.msra.mxu0 0.0
        %221 = vmatpush.msra.mxu0 0.0
        %222 = vmatpush.msra.mxu0 0.0
        %223 = vmatpush.msra.mxu0 0.0
        %224 = vmatpush.msra.mxu0 0.0
        %225 = vmatpush.msra.mxu0 0.0
        %226 = vmatpush.msra.mxu0 0.0
        %227 = vmatpush.msra.mxu0 0.0
        %228 = vmatpush.msra.mxu0 0.0
        %229 = vmatpush.msra.mxu0 0.0
        %230 = vmatpush.msra.mxu0 0.0
        %231 = vmatpush.msra.mxu0 0.0
        %232 = vmatpush.msra.mxu0 0.0
        %233 = vmatpush.msra.mxu0 0.0
        %234 = vmatpush.msra.mxu0 %v185
        %235 = vmatmul.f32.gmra.mxu0 %v168
        %v236 = vpop.f32.mrf.mxu0
        %v237 = vadd.f32 0.0, %v236
        %238 = vmatmul.f32.gmra.mxu0 %v171
        %v239 = vpop.f32.mrf.mxu0
        %v240 = vadd.f32 0.0, %v239
        %241 = vmatmul.f32.gmra.mxu0 %v174
        %v242 = vpop.f32.mrf.mxu0
        %v243 = vadd.f32 0.0, %v242
        %244 = vmatmul.f32.gmra.mxu0 %v177
        %v245 = vpop.f32.mrf.mxu0
        %v246 = vadd.f32 0.0, %v245
        %247 = vmatmul.f32.gmra.mxu0 %v180
        %v248 = vpop.f32.mrf.mxu0
        %v249 = vadd.f32 0.0, %v248
        %250 = vdwg.mxu0
        %251 = vst [vmem:[#allocation2] sm:$0xff] %v205
        %252 = vst [vmem:[#allocation2 + $0x8] sm:$0xff] %v237
        %253 = vst [vmem:[#allocation2 + $0x18] sm:$0xff] %v208
        %254 = vst [vmem:[#allocation2 + $0x20] sm:$0xff] %v240
        %255 = vst [vmem:[#allocation2 + $0x30] sm:$0xff] %v211
        %256 = vst [vmem:[#allocation2 + $0x38] sm:$0xff] %v243
        %257 = vst [vmem:[#allocation2 + $0x48] sm:$0xff] %v214
        %258 = vst [vmem:[#allocation2 + $0x50] sm:$0xff] %v246
        %259 = vst [vmem:[#allocation2 + $0x60] sm:$0xf] %v217
        %260 = vst [vmem:[#allocation2 + $0x68] sm:$0xf] %v249
        %v261 = vld [vmem:[#allocation2] ss:$8 sm:$0x3]
        %v262 = vadd.f32 %v261, 0.0
        %s263 = scalar_lea.vmem [#allocation2], 1
        %v264 = vld [vmem:[%s263] ss:$8 sm:$0x7]
        %266 = vrot.lane.b32.xlu0 %v264, 127
        %v267 = vpop.permute.xlu0 %266
        %v268 = vrot.slane %v267, 1
        %vm269 = vcmask 1039360
        %v270 = vsel %vm269, %v267, %v268
        %v272 = vadd.f32 %v262, %v270
        %s273 = scalar_lea.vmem [#allocation2], 2
        %v274 = vld [vmem:[%s273] ss:$8 sm:$0x7]
        %276 = vrot.lane.b32.xlu0 %v274, 126
        %v277 = vpop.permute.xlu0 %276
        %v278 = vrot.slane %v277, 1
        %vm279 = vcmask 1031168
        %v280 = vsel %vm279, %v277, %v278
        %v282 = vadd.f32 %v272, %v280
        %s283 = scalar_lea.vmem [#allocation2], 3
        %v284 = vld [vmem:[%s283] ss:$8 sm:$0x7]
        %286 = vrot.lane.b32.xlu0 %v284, 125
        %v287 = vpop.permute.xlu0 %286
        %v288 = vrot.slane %v287, 1
        %vm289 = vcmask 1022976
        %v290 = vsel %vm289, %v287, %v288
        %v292 = vadd.f32 %v282, %v290
        %s293 = scalar_lea.vmem [#allocation2], 4
        %v294 = vld [vmem:[%s293] ss:$8 sm:$0x7]
        %296 = vrot.lane.b32.xlu0 %v294, 124
        %v297 = vpop.permute.xlu0 %296
        %v298 = vrot.slane %v297, 1
        %vm299 = vcmask 1014784
        %v300 = vsel %vm299, %v297, %v298
        %v302 = vadd.f32 %v292, %v300
        %s303 = scalar_lea.vmem [#allocation2], 5
        %v304 = vld [vmem:[%s303] ss:$8 sm:$0x7]
        %306 = vrot.lane.b32.xlu0 %v304, 123
        %v307 = vpop.permute.xlu0 %306
        %v308 = vrot.slane %v307, 1
        %vm309 = vcmask 1006592
        %v310 = vsel %vm309, %v307, %v308
        %v312 = vadd.f32 %v302, %v310
        %s313 = scalar_lea.vmem [#allocation2], 6
        %v314 = vld [vmem:[%s313] ss:$8 sm:$0x7]
        %316 = vrot.lane.b32.xlu0 %v314, 112
        %v317 = vpop.permute.xlu0 %316
        %v318 = vrot.slane %v317, 1
        %vm319 = vcmask 916480
        %v320 = vsel %vm319, %v317, %v318
        %v322 = vadd.f32 %v312, %v320
        %s323 = scalar_lea.vmem [#allocation2], 7
        %v324 = vld [vmem:[%s323] ss:$8 sm:$0x7]
        %326 = vrot.lane.b32.xlu0 %v324, 111
        %v327 = vpop.permute.xlu0 %326
        %v328 = vrot.slane %v327, 1
        %vm329 = vcmask 908288
        %v330 = vsel %vm329, %v327, %v328
        %v332 = vadd.f32 %v322, %v330
        %s333 = scalar_lea.vmem [#allocation2], 24
        %v334 = vld [vmem:[%s333] ss:$8 sm:$0x7]
        %336 = vrot.lane.b32.xlu0 %v334, 110
        %v337 = vpop.permute.xlu0 %336
        %v338 = vrot.slane %v337, 1
        %vm339 = vcmask 900096
        %v340 = vsel %vm339, %v337, %v338
        %v342 = vadd.f32 %v332, %v340
        %s343 = scalar_lea.vmem [#allocation2], 25
        %v344 = vld [vmem:[%s343] ss:$8 sm:$0x7]
        %346 = vrot.lane.b32.xlu0 %v344, 109
        %v347 = vpop.permute.xlu0 %346
        %v348 = vrot.slane %v347, 1
        %vm349 = vcmask 891904
        %v350 = vsel %vm349, %v347, %v348
        %v352 = vadd.f32 %v342, %v350
        %s353 = scalar_lea.vmem [#allocation2], 26
        %v354 = vld [vmem:[%s353] ss:$8 sm:$0x7]
        %356 = vrot.lane.b32.xlu0 %v354, 108
        %v357 = vpop.permute.xlu0 %356
        %v358 = vrot.slane %v357, 1
        %vm359 = vcmask 883712
        %v360 = vsel %vm359, %v357, %v358
        %v362 = vadd.f32 %v352, %v360
        %s363 = scalar_lea.vmem [#allocation2], 27
        %v364 = vld [vmem:[%s363] ss:$8 sm:$0x7]
        %366 = vrot.lane.b32.xlu0 %v364, 107
        %v367 = vpop.permute.xlu0 %366
        %v368 = vrot.slane %v367, 1
        %vm369 = vcmask 875520
        %v370 = vsel %vm369, %v367, %v368
        %v372 = vadd.f32 %v362, %v370
        %s373 = scalar_lea.vmem [#allocation2], 28
        %v374 = vld [vmem:[%s373] ss:$8 sm:$0x7]
        %376 = vrot.lane.b32.xlu0 %v374, 96
        %v377 = vpop.permute.xlu0 %376
        %v378 = vrot.slane %v377, 1
        %vm379 = vcmask 785408
        %v380 = vsel %vm379, %v377, %v378
        %v382 = vadd.f32 %v372, %v380
        %s383 = scalar_lea.vmem [#allocation2], 29
        %v384 = vld [vmem:[%s383] ss:$8 sm:$0x7]
        %386 = vrot.lane.b32.xlu0 %v384, 95
        %v387 = vpop.permute.xlu0 %386
        %v388 = vrot.slane %v387, 1
        %vm389 = vcmask 777216
        %v390 = vsel %vm389, %v387, %v388
        %v392 = vadd.f32 %v382, %v390
        %s393 = scalar_lea.vmem [#allocation2], 30
        %v394 = vld [vmem:[%s393] ss:$8 sm:$0x7]
        %396 = vrot.lane.b32.xlu0 %v394, 94
        %v397 = vpop.permute.xlu0 %396
        %v398 = vrot.slane %v397, 1
        %vm399 = vcmask 769024
        %v400 = vsel %vm399, %v397, %v398
        %v402 = vadd.f32 %v392, %v400
        %s403 = scalar_lea.vmem [#allocation2], 31
        %v404 = vld [vmem:[%s403] ss:$8 sm:$0x7]
        %406 = vrot.lane.b32.xlu0 %v404, 93
        %v407 = vpop.permute.xlu0 %406
        %v408 = vrot.slane %v407, 1
        %vm409 = vcmask 760832
        %v410 = vsel %vm409, %v407, %v408
        %v412 = vadd.f32 %v402, %v410
        %s413 = scalar_lea.vmem [#allocation2], 48
        %v414 = vld [vmem:[%s413] ss:$8 sm:$0x7]
        %416 = vrot.lane.b32.xlu0 %v414, 92
        %v417 = vpop.permute.xlu0 %416
        %v418 = vrot.slane %v417, 1
        %vm419 = vcmask 752640
        %v420 = vsel %vm419, %v417, %v418
        %v422 = vadd.f32 %v412, %v420
        %s423 = scalar_lea.vmem [#allocation2], 49
        %v424 = vld [vmem:[%s423] ss:$8 sm:$0x7]
        %426 = vrot.lane.b32.xlu0 %v424, 91
        %v427 = vpop.permute.xlu0 %426
        %v428 = vrot.slane %v427, 1
        %vm429 = vcmask 744448
        %v430 = vsel %vm429, %v427, %v428
        %v432 = vadd.f32 %v422, %v430
        %s433 = scalar_lea.vmem [#allocation2], 50
        %v434 = vld [vmem:[%s433] ss:$8 sm:$0x7]
        %436 = vrot.lane.b32.xlu0 %v434, 80
        %v437 = vpop.permute.xlu0 %436
        %v438 = vrot.slane %v437, 1
        %vm439 = vcmask 654336
        %v440 = vsel %vm439, %v437, %v438
        %v442 = vadd.f32 %v432, %v440
        %s443 = scalar_lea.vmem [#allocation2], 51
        %v444 = vld [vmem:[%s443] ss:$8 sm:$0x7]
        %446 = vrot.lane.b32.xlu0 %v444, 79
        %v447 = vpop.permute.xlu0 %446
        %v448 = vrot.slane %v447, 1
        %vm449 = vcmask 646144
        %v450 = vsel %vm449, %v447, %v448
        %v452 = vadd.f32 %v442, %v450
        %s453 = scalar_lea.vmem [#allocation2], 52
        %v454 = vld [vmem:[%s453] ss:$8 sm:$0x7]
        %456 = vrot.lane.b32.xlu0 %v454, 78
        %v457 = vpop.permute.xlu0 %456
        %v458 = vrot.slane %v457, 1
        %vm459 = vcmask 637952
        %v460 = vsel %vm459, %v457, %v458
        %v462 = vadd.f32 %v452, %v460
        %s463 = scalar_lea.vmem [#allocation2], 53
        %v464 = vld [vmem:[%s463] ss:$8 sm:$0x7]
        %466 = vrot.lane.b32.xlu0 %v464, 77
        %v467 = vpop.permute.xlu0 %466
        %v468 = vrot.slane %v467, 1
        %vm469 = vcmask 629760
        %v470 = vsel %vm469, %v467, %v468
        %v472 = vadd.f32 %v462, %v470
        %s473 = scalar_lea.vmem [#allocation2], 54
        %v474 = vld [vmem:[%s473] ss:$8 sm:$0x7]
        %476 = vrot.lane.b32.xlu0 %v474, 76
        %v477 = vpop.permute.xlu0 %476
        %v478 = vrot.slane %v477, 1
        %vm479 = vcmask 621568
        %v480 = vsel %vm479, %v477, %v478
        %v482 = vadd.f32 %v472, %v480
        %s483 = scalar_lea.vmem [#allocation2], 55
        %v484 = vld [vmem:[%s483] ss:$8 sm:$0x7]
        %486 = vrot.lane.b32.xlu0 %v484, 75
        %v487 = vpop.permute.xlu0 %486
        %v488 = vrot.slane %v487, 1
        %vm489 = vcmask 613376
        %v490 = vsel %vm489, %v487, %v488
        %v492 = vadd.f32 %v482, %v490
        %s493 = scalar_lea.vmem [#allocation2], 72
        %v494 = vld [vmem:[%s493] ss:$8 sm:$0x7]
        %496 = vrot.lane.b32.xlu0 %v494, 64
        %v497 = vpop.permute.xlu0 %496
        %v498 = vrot.slane %v497, 1
        %vm499 = vcmask 523264
        %v500 = vsel %vm499, %v497, %v498
        %v502 = vadd.f32 %v492, %v500
        %s503 = scalar_lea.vmem [#allocation2], 73
        %v504 = vld [vmem:[%s503] ss:$8 sm:$0x7]
        %506 = vrot.lane.b32.xlu0 %v504, 63
        %v507 = vpop.permute.xlu0 %506
        %v508 = vrot.slane %v507, 1
        %vm509 = vcmask 515072
        %v510 = vsel %vm509, %v507, %v508
        %v512 = vadd.f32 %v502, %v510
        %s513 = scalar_lea.vmem [#allocation2], 74
        %v514 = vld [vmem:[%s513] ss:$8 sm:$0x7]
        %516 = vrot.lane.b32.xlu0 %v514, 62
        %v517 = vpop.permute.xlu0 %516
        %v518 = vrot.slane %v517, 1
        %vm519 = vcmask 506880
        %v520 = vsel %vm519, %v517, %v518
        %v522 = vadd.f32 %v512, %v520
        %s523 = scalar_lea.vmem [#allocation2], 75
        %v524 = vld [vmem:[%s523] ss:$8 sm:$0x7]
        %526 = vrot.lane.b32.xlu0 %v524, 61
        %v527 = vpop.permute.xlu0 %526
        %v528 = vrot.slane %v527, 1
        %vm529 = vcmask 498688
        %v530 = vsel %vm529, %v527, %v528
        %v532 = vadd.f32 %v522, %v530
        %s533 = scalar_lea.vmem [#allocation2], 76
        %v534 = vld [vmem:[%s533] ss:$8 sm:$0x7]
        %536 = vrot.lane.b32.xlu0 %v534, 60
        %v537 = vpop.permute.xlu0 %536
        %v538 = vrot.slane %v537, 1
        %vm539 = vcmask 490496
        %v540 = vsel %vm539, %v537, %v538
        %v542 = vadd.f32 %v532, %v540
        %s543 = scalar_lea.vmem [#allocation2], 77
        %v544 = vld [vmem:[%s543] ss:$8 sm:$0x7]
        %546 = vrot.lane.b32.xlu0 %v544, 59
        %v547 = vpop.permute.xlu0 %546
        %v548 = vrot.slane %v547, 1
        %vm549 = vcmask 482304
        %v550 = vsel %vm549, %v547, %v548
        %v552 = vadd.f32 %v542, %v550
        %s553 = scalar_lea.vmem [#allocation2], 78
        %v554 = vld [vmem:[%s553] ss:$8 sm:$0x7]
        %556 = vrot.lane.b32.xlu0 %v554, 48
        %v557 = vpop.permute.xlu0 %556
        %v558 = vrot.slane %v557, 1
        %vm559 = vcmask 392192
        %v560 = vsel %vm559, %v557, %v558
        %v562 = vadd.f32 %v552, %v560
        %s563 = scalar_lea.vmem [#allocation2], 79
        %v564 = vld [vmem:[%s563] ss:$8 sm:$0x7]
        %566 = vrot.lane.b32.xlu0 %v564, 47
        %v567 = vpop.permute.xlu0 %566
        %v568 = vrot.slane %v567, 1
        %vm569 = vcmask 384000
        %v570 = vsel %vm569, %v567, %v568
        %v572 = vadd.f32 %v562, %v570
        %s573 = scalar_lea.vmem [#allocation2], 96
        %v574 = vld [vmem:[%s573] ss:$8 sm:$0x7]
        %576 = vrot.lane.b32.xlu0 %v574, 46
        %v577 = vpop.permute.xlu0 %576
        %v578 = vrot.slane %v577, 1
        %vm579 = vcmask 375808
        %v580 = vsel %vm579, %v577, %v578
        %v582 = vadd.f32 %v572, %v580
        %s583 = scalar_lea.vmem [#allocation2], 97
        %v584 = vld [vmem:[%s583] ss:$8 sm:$0x7]
        %586 = vrot.lane.b32.xlu0 %v584, 45
        %v587 = vpop.permute.xlu0 %586
        %v588 = vrot.slane %v587, 1
        %vm589 = vcmask 367616
        %v590 = vsel %vm589, %v587, %v588
        %v592 = vadd.f32 %v582, %v590
        %s593 = scalar_lea.vmem [#allocation2], 98
        %v594 = vld [vmem:[%s593] ss:$8 sm:$0x7]
        %596 = vrot.lane.b32.xlu0 %v594, 44
        %v597 = vpop.permute.xlu0 %596
        %v598 = vrot.slane %v597, 1
        %vm599 = vcmask 359424
        %v600 = vsel %vm599, %v597, %v598
        %v602 = vadd.f32 %v592, %v600
        %s603 = scalar_lea.vmem [#allocation2], 99
        %v604 = vld [vmem:[%s603] ss:$8 sm:$0x7]
        %606 = vrot.lane.b32.xlu0 %v604, 43
        %v607 = vpop.permute.xlu0 %606
        %v608 = vrot.slane %v607, 1
        %vm609 = vcmask 351232
        %v610 = vsel %vm609, %v607, %v608
        %v612 = vadd.f32 %v602, %v610
        %v613 = vmul.f32 %v612, 0.001
        %v614 = vlaneseq
        %vm615 = vcmp.ge.s32.totalorder %v614, 0
        %vm616 = vcmp.lt.s32.totalorder %v614, 256
        %vm617 = vmand %vm615, %vm616
        %618 = vst.msk [vmem:[%s136] sm:$0x3] %vm617, %v613
        %s619 = sand.u32 %s71, 1
        %s620 = scalar_lea.sflag [#allocation4], %s619
        %s621 = sand.u32 %s71, 1
        %s622 = smul.addr %s621, 2
        %s623 = scalar_lea.vmem [#allocation3], %s622
        // Predicated region
        $region29: #{tpu_custom_call.1} parent=27 // pred_check
          %p624 = pneg %p81
        $region30: #{tpu_custom_call.1} parent=27 // pred_check_branch
          %626 = sbr.rel (%p624) target = $region32
        $region31: #{tpu_custom_call.1} parent=27 // pred_region
          %628 = vsyncadd %s620, 0
          %s629 = smul.addr %s16, 2
          %s630 = scalar_lea.hbm %s2, %s629
          %s632 = sshll.u32 %s623, 4
          %s633 = int_to_ptr.vmem [resolvable:$true] %s632
          %s634 = sshll.u32 %s630, 4
          %s635 = int_to_ptr.hbm [resolvable:$true] %s634
          %637 = dma.vmem_to_hbm [thread:$0]  %s633, 32, %s635, %s620
        $region32: #{tpu_custom_call.1} parent=27 // pred_fallthru
          _
      $region28: #{tpu_custom_call.1} parent=5 // pred_fallthru
        _
      %p638 = scmp.le.s32.totalorder 2, %s11
      // Predicated region
      $region33: #{tpu_custom_call.1} parent=5 // pred_check
        %p639 = pneg %p638
      $region34: #{tpu_custom_call.1} parent=5 // pred_check_branch
        %641 = sbr.rel (%p639) target = $region36
      $region35: #{tpu_custom_call.1} parent=5 // pred_region
        %s642 = ssub.s32 %s11, 2
        // Predicated region
        $region37: #{tpu_custom_call.1} parent=35 // pred_check
          %p643 = pneg %p87
        $region38: #{tpu_custom_call.1} parent=35 // pred_check_branch
          %645 = sbr.rel (%p643) target = $region40
        $region39: #{tpu_custom_call.1} parent=35 // pred_region
          %s646 = sand.u32 %s72, 1
          %s647 = scalar_lea.sflag [#allocation4], %s646
          %s648 = sand.u32 %s72, 1
          %s649 = smul.addr %s648, 2
          %s650 = scalar_lea.vmem [#allocation3], %s649
          %652 = dma.done %s647, 32
        $region40: #{tpu_custom_call.1} parent=35 // pred_fallthru
          _
      $region36: #{tpu_custom_call.1} parent=5 // pred_fallthru
        _
    $region6: #{tpu_custom_call.1} parent=1 // loop_footer
      %s15 = sadd.s32 1, %s11
    $region7: #{tpu_custom_call.1} parent=1 // loop_footer_branch
      %10 = sbr.rel target = $region3
    $region8: #{tpu_custom_call.1} parent=1 // loop_exit
      _
    %653 = vsyncpa [#allocation4], 1
    %s654 = scalar_lea.sflag [#allocation4], 1
    %655 = vsyncpa %s654, 1

</llo_original>
